<compile_context>
chip_gen: v7x
topology: tpu7x:2x2x1
jax: 0.10.0
libtpu: 0.0.40
codegen_flags: <defaults>
</compile_context>

<pallas_src>
import jax
import jax.numpy as jnp
from jax.experimental import pallas as pl
from jax.experimental.pallas import tpu as pltpu


# ---------------------------------------------------------------------------
# Fused kernel: layer0 -> layer1 -> padded classifier head, straight-line code
# ---------------------------------------------------------------------------
def _fc_rec_fused_kernel(x_ref, w0_ref, b0_ref, w1_ref, b1_ref, w2_ref, b2_ref,
                         o_ref):
    # Layer 0: relu(x @ W0' + b0')   (eval-mode BN folded into W0'/b0').
    # bf16 x bf16 on the MXU, f32 accumulation; epilogue stays in f32.
    h0 = jnp.dot(x_ref[...], w0_ref[...], preferred_element_type=jnp.float32)
    h0 = jnp.maximum(h0 + b0_ref[...], 0.0)

    # Layer 1: relu(h0 @ W1' + b1')
    h1 = jnp.dot(h0.astype(w1_ref.dtype), w1_ref[...],
                 preferred_element_type=jnp.float32)
    h1 = jnp.maximum(h1 + b1_ref[...], 0.0)

    # Classifier head (zero-padded to 128 output lanes -> unmasked stores)
    y = jnp.dot(h1.astype(w2_ref.dtype), w2_ref[...],
                preferred_element_type=jnp.float32)
    o_ref[...] = (y + b2_ref[...]).astype(o_ref.dtype)


# ---------------------------------------------------------------------------
# Wrapper: single fused launch, batch tiled over a parallel grid axis
# ---------------------------------------------------------------------------
def _round_up(x, m):
    return ((x + m - 1) // m) * m


def _select_batch_tiling(B):
    """Pick (padded batch, batch tile).  Multiples of 16 for bf16 sublane packing."""
    Bp = _round_up(B, 16)
    if Bp < 256:
        # Tiny batch: launch / weight-DMA bound; a single tile is optimal.
        tb = Bp
    elif Bp <= 2048:
        # >=2 grid steps so v7x's second TensorCore has work; tiles capped at 1024.
        tb = min(1024, _round_up(pl.cdiv(Bp, 2), 16))
    else:
        # Large batch: 1024-row tiles (safe under v5e's 16 MiB scoped-VMEM default,
        # ~85%+ of HBM roofline per measured tiled-kernel data).
        tb = 1024
    Bp = _round_up(Bp, tb)
    return Bp, tb


def fc_rec_forward(x, folded_params, num_classes):
    w0, b0, w1, b1, w2p, b2p = folded_params
    B, K = x.shape
    HEAD = w2p.shape[1]          # lane-dense padded head width (128)

    Bp, TB = _select_batch_tiling(B)

    # Cast activations to bf16 (weights were cast once in fold_params); pad after the
    # cast so any pad copy is half-width.  Pad rows are sliced off below.
    x = x.astype(jnp.bfloat16)
    if Bp != B:
        x = jnp.pad(x, ((0, Bp - B), (0, 0)))

    out = pl.pallas_call(
        _fc_rec_fused_kernel,
        out_shape=jax.ShapeDtypeStruct((Bp, HEAD), jnp.float32),
        grid=(Bp // TB,),
        in_specs=[
            pl.BlockSpec((TB, K), lambda i: (i, 0)),     # activations: tiled on batch
            pl.BlockSpec(w0.shape, lambda i: (0, 0)),    # constant index -> weights
            pl.BlockSpec(b0.shape, lambda i: (0, 0)),    #   stay VMEM-resident, no
            pl.BlockSpec(w1.shape, lambda i: (0, 0)),    #   re-DMA across batch tiles
            pl.BlockSpec(b1.shape, lambda i: (0, 0)),
            pl.BlockSpec(w2p.shape, lambda i: (0, 0)),
            pl.BlockSpec(b2p.shape, lambda i: (0, 0)),
        ],
        out_specs=pl.BlockSpec((TB, HEAD), lambda i: (i, 0)),
        compiler_params=pltpu.CompilerParams(
            dimension_semantics=("parallel",),           # dual-TC sharding on v7x
        ),
    )(x, w0, b0, w1, b1, w2p, b2p)

    return out[:B, :num_classes]


# ---------------------------------------------------------------------------
# Parameter construction + BN/bias folding (host-side, one-time)
# ---------------------------------------------------------------------------
def _make_linear_params(key, in_f, out_f):
    kw, kb = jax.random.split(key)
    bound = 1.0 / jnp.sqrt(jnp.float32(in_f))
    # PyTorch stores weight as [out, in]; we keep it transposed [in, out].
    w = jax.random.uniform(kw, (in_f, out_f), jnp.float32, -bound, bound)
    b = jax.random.uniform(kb, (1, out_f), jnp.float32, -bound, bound)
    return w, b


def _make_bn_params(key, num_features, eps=1e-5):
    k1, k2 = jax.random.split(key)
    gamma = jnp.ones((1, num_features), jnp.float32)
    beta = jnp.zeros((1, num_features), jnp.float32)
    # Non-trivial running stats (deterministic) so the BN path is exercised.
    running_mean = 0.1 * jax.random.normal(k1, (1, num_features), jnp.float32)
    running_var = 1.0 + 0.1 * jax.random.uniform(k2, (1, num_features), jnp.float32)
    scale = gamma / jnp.sqrt(running_var + eps)
    shift = beta - running_mean * scale
    return scale, shift


def fold_params(params, head_width=128):
    """Fold eval-mode BatchNorm into the weights, cast weights to bf16 (f32 biases),
    and pad the classifier head to a lane-dense width."""
    (w0, b0, s0, t0), (w1, b1, s1, t1), (w2, b2) = params
    w0f = (w0 * s0).astype(jnp.bfloat16)     # per-output-column scale folds into W
    b0f = (b0 * s0 + t0).astype(jnp.float32)
    w1f = (w1 * s1).astype(jnp.bfloat16)
    b1f = (b1 * s1 + t1).astype(jnp.float32)
    n = w2.shape[1]
    w2p = jnp.zeros((w2.shape[0], head_width), jnp.float32).at[:, :n].set(w2)
    b2p = jnp.zeros((1, head_width), jnp.float32).at[:, :n].set(b2)
    return (w0f, b0f, w1f, b1f, w2p.astype(jnp.bfloat16), b2p)


# ---------------------------------------------------------------------------
# Pure-JAX reference (unfolded f32 params) for a sanity check
# ---------------------------------------------------------------------------
def fc_rec_reference(x, params):
    (w0, b0, s0, t0), (w1, b1, s1, t1), (w2, b2) = params
    x = jnp.maximum((x @ w0 + b0) * s0 + t0, 0.0)
    x = jnp.maximum((x @ w1 + b1) * s1 + t1, 0.0)
    return x @ w2 + b2


if __name__ == "__main__":
    num_classes = 11
    batch = 8

    key = jax.random.PRNGKey(0)
    k_x, k_l0, k_bn0, k_l1, k_bn1, k_l2 = jax.random.split(key, 6)

    x = jax.random.normal(k_x, (batch, 512), jnp.float32)

    w0, b0 = _make_linear_params(k_l0, 512, 256)
    s0, t0 = _make_bn_params(k_bn0, 256)
    w1, b1 = _make_linear_params(k_l1, 256, 128)
    s1, t1 = _make_bn_params(k_bn1, 128)
    w2, b2 = _make_linear_params(k_l2, 128, num_classes)

    params = ((w0, b0, s0, t0), (w1, b1, s1, t1), (w2, b2))
    folded = fold_params(params)

    out = jax.block_until_ready(fc_rec_forward(x, folded, num_classes))
    ref = fc_rec_reference(x, params)

    assert out.shape == (batch, num_classes), out.shape
    # bf16 MXU inputs with f32 accumulation vs. a full-f32 reference: loosen tolerance.
    assert jnp.allclose(out, ref, atol=5e-2, rtol=5e-2), "mismatch vs reference"

    print("KERNEL_OK")
</pallas_src>

<mosaic_0001>
module attributes {stable_mosaic.version = 11 : i64} {
  func.func @_fc_rec_fused_kernel(%arg0: i32, %arg1: memref<16x512xbf16, #tpu.memory_space<vmem>>, %arg2: memref<512x256xbf16, #tpu.memory_space<vmem>>, %arg3: memref<1x256xf32, #tpu.memory_space<vmem>>, %arg4: memref<256x128xbf16, #tpu.memory_space<vmem>>, %arg5: memref<1x128xf32, #tpu.memory_space<vmem>>, %arg6: memref<128x128xbf16, #tpu.memory_space<vmem>>, %arg7: memref<1x128xf32, #tpu.memory_space<vmem>>, %arg8: memref<16x128xf32, #tpu.memory_space<vmem>>) attributes {dimension_semantics = [#tpu.dimension_semantics<parallel>], iteration_bounds = array<i64: 1>, scalar_prefetch = 0 : i64, scratch_operands = 0 : i64, tpu.core_type = #tpu.core_type<tc>, window_params = [{transform_indices = @transform_0, window_bounds = array<i64: 16, 512>}, {pipeline_mode = #tpu.pipeline_mode<synchronous>, transform_indices = @transform_1, window_bounds = array<i64: 512, 256>}, {pipeline_mode = #tpu.pipeline_mode<synchronous>, transform_indices = @transform_2, window_bounds = array<i64: 1, 256>}, {pipeline_mode = #tpu.pipeline_mode<synchronous>, transform_indices = @transform_3, window_bounds = array<i64: 256, 128>}, {pipeline_mode = #tpu.pipeline_mode<synchronous>, transform_indices = @transform_4, window_bounds = array<i64: 1, 128>}, {pipeline_mode = #tpu.pipeline_mode<synchronous>, transform_indices = @transform_5, window_bounds = array<i64: 128, 128>}, {pipeline_mode = #tpu.pipeline_mode<synchronous>, transform_indices = @transform_6, window_bounds = array<i64: 1, 128>}, {transform_indices = @transform_7, window_bounds = array<i64: 16, 128>}]} {
    %c0 = arith.constant 0 : index
    %c0_0 = arith.constant 0 : index
    %0 = vector.load %arg1[%c0, %c0_0] : memref<16x512xbf16, #tpu.memory_space<vmem>>, vector<16x512xbf16>
    %c0_1 = arith.constant 0 : index
    %c0_2 = arith.constant 0 : index
    %1 = vector.load %arg2[%c0_1, %c0_2] : memref<512x256xbf16, #tpu.memory_space<vmem>>, vector<512x256xbf16>
    %cst = arith.constant dense<0.000000e+00> : vector<16x256xf32>
    %2 = tpu.matmul %0, %1, %cst {dimension_numbers = #tpu.dot_dimension_numbers<[1], [0], [0], [1], [0, 0, 1, 1], [], []>} : vector<16x512xbf16>, vector<512x256xbf16>, vector<16x256xf32> -> vector<16x256xf32>
    %c0_3 = arith.constant 0 : index
    %c0_4 = arith.constant 0 : index
    %3 = vector.load %arg3[%c0_3, %c0_4] : memref<1x256xf32, #tpu.memory_space<vmem>>, vector<1x256xf32>
    %4 = vector.broadcast %3 : vector<1x256xf32> to vector<16x256xf32>
    %5 = arith.addf %2, %4 : vector<16x256xf32>
    %cst_5 = arith.constant 0.000000e+00 : f32
    %6 = vector.broadcast %cst_5 : f32 to vector<16x256xf32>
    %7 = arith.maximumf %5, %6 : vector<16x256xf32>
    %8 = arith.truncf %7 : vector<16x256xf32> to vector<16x256xbf16>
    %c0_6 = arith.constant 0 : index
    %c0_7 = arith.constant 0 : index
    %9 = vector.load %arg4[%c0_6, %c0_7] : memref<256x128xbf16, #tpu.memory_space<vmem>>, vector<256x128xbf16>
    %cst_8 = arith.constant dense<0.000000e+00> : vector<16x128xf32>
    %10 = tpu.matmul %8, %9, %cst_8 {dimension_numbers = #tpu.dot_dimension_numbers<[1], [0], [0], [1], [0, 0, 1, 1], [], []>} : vector<16x256xbf16>, vector<256x128xbf16>, vector<16x128xf32> -> vector<16x128xf32>
    %c0_9 = arith.constant 0 : index
    %c0_10 = arith.constant 0 : index
    %11 = vector.load %arg5[%c0_9, %c0_10] : memref<1x128xf32, #tpu.memory_space<vmem>>, vector<1x128xf32>
    %12 = vector.broadcast %11 : vector<1x128xf32> to vector<16x128xf32>
    %13 = arith.addf %10, %12 : vector<16x128xf32>
    %cst_11 = arith.constant 0.000000e+00 : f32
    %14 = vector.broadcast %cst_11 : f32 to vector<16x128xf32>
    %15 = arith.maximumf %13, %14 : vector<16x128xf32>
    %16 = arith.truncf %15 : vector<16x128xf32> to vector<16x128xbf16>
    %c0_12 = arith.constant 0 : index
    %c0_13 = arith.constant 0 : index
    %17 = vector.load %arg6[%c0_12, %c0_13] : memref<128x128xbf16, #tpu.memory_space<vmem>>, vector<128x128xbf16>
    %cst_14 = arith.constant dense<0.000000e+00> : vector<16x128xf32>
    %18 = tpu.matmul %16, %17, %cst_14 {dimension_numbers = #tpu.dot_dimension_numbers<[1], [0], [0], [1], [0, 0, 1, 1], [], []>} : vector<16x128xbf16>, vector<128x128xbf16>, vector<16x128xf32> -> vector<16x128xf32>
    %c0_15 = arith.constant 0 : index
    %c0_16 = arith.constant 0 : index
    %19 = vector.load %arg7[%c0_15, %c0_16] : memref<1x128xf32, #tpu.memory_space<vmem>>, vector<1x128xf32>
    %20 = vector.broadcast %19 : vector<1x128xf32> to vector<16x128xf32>
    %21 = arith.addf %18, %20 : vector<16x128xf32>
    %c0_17 = arith.constant 0 : index
    %c0_18 = arith.constant 0 : index
    %22 = vector.load %arg8[%c0_17, %c0_18] : memref<16x128xf32, #tpu.memory_space<vmem>>, vector<16x128xf32>
    tpu.vector_store %arg8[%c0_17, %c0_18], %21 {strides = array<i32>} : memref<16x128xf32, #tpu.memory_space<vmem>>, vector<16x128xf32>,
    return
  }
  func.func @transform_0(%arg0: i32) -> (i32, i32) {
    %c0_i32 = arith.constant 0 : i32
    %c0_i32_0 = arith.constant 0 : i32
    return %arg0, %c0_i32 : i32, i32
  }
  func.func @transform_1(%arg0: i32) -> (i32, i32) {
    %c0_i32 = arith.constant 0 : i32
    %c0_i32_0 = arith.constant 0 : i32
    %c0_i32_1 = arith.constant 0 : i32
    return %c0_i32, %c0_i32_0 : i32, i32
  }
  func.func @transform_2(%arg0: i32) -> (i32, i32) {
    %c0_i32 = arith.constant 0 : i32
    %c0_i32_0 = arith.constant 0 : i32
    %c0_i32_1 = arith.constant 0 : i32
    return %c0_i32, %c0_i32_0 : i32, i32
  }
  func.func @transform_3(%arg0: i32) -> (i32, i32) {
    %c0_i32 = arith.constant 0 : i32
    %c0_i32_0 = arith.constant 0 : i32
    %c0_i32_1 = arith.constant 0 : i32
    return %c0_i32, %c0_i32_0 : i32, i32
  }
  func.func @transform_4(%arg0: i32) -> (i32, i32) {
    %c0_i32 = arith.constant 0 : i32
    %c0_i32_0 = arith.constant 0 : i32
    %c0_i32_1 = arith.constant 0 : i32
    return %c0_i32, %c0_i32_0 : i32, i32
  }
  func.func @transform_5(%arg0: i32) -> (i32, i32) {
    %c0_i32 = arith.constant 0 : i32
    %c0_i32_0 = arith.constant 0 : i32
    %c0_i32_1 = arith.constant 0 : i32
    return %c0_i32, %c0_i32_0 : i32, i32
  }
  func.func @transform_6(%arg0: i32) -> (i32, i32) {
    %c0_i32 = arith.constant 0 : i32
    %c0_i32_0 = arith.constant 0 : i32
    %c0_i32_1 = arith.constant 0 : i32
    return %c0_i32, %c0_i32_0 : i32, i32
  }
  func.func @transform_7(%arg0: i32) -> (i32, i32) {
    %c0_i32 = arith.constant 0 : i32
    %c0_i32_0 = arith.constant 0 : i32
    return %arg0, %c0_i32 : i32, i32
  }
}

</mosaic_0001>

<llo_original>
// kernel: tpu_custom_call.1
$region0: #{tpu_custom_call.1}
  #allocation0 [shape = 'u32[]', space=smem, size = 0x4, offset = 0x4, fixed_abs, tag = 'smem constant byte address 0x4 - core index']
  #allocation1 [shape = 'u32[144,128]{1,0:T(1,128)}', space=vmem, size = 0x12000, scoped, tag = 'internal scratch']
  %s0 = inlined_call_operand.hbm [shape: bf16[16,512], index: 0, kind: input, shape index: {}]
  %s1 = inlined_call_operand.hbm [shape: bf16[512,256], index: 1, kind: input, shape index: {}]
  %s2 = inlined_call_operand.vmem [shape: f32[1,256], index: 2, kind: input, shape index: {}]
  %s3 = inlined_call_operand.hbm [shape: bf16[256,128], index: 3, kind: input, shape index: {}]
  %s4 = inlined_call_operand.vmem [shape: f32[1,128], index: 4, kind: input, shape index: {}]
  %s5 = inlined_call_operand.hbm [shape: bf16[128,128], index: 5, kind: input, shape index: {}]
  %s6 = inlined_call_operand.vmem [shape: f32[1,128], index: 6, kind: input, shape index: {}]
  %s7 = inlined_call_operand.hbm [shape: f32[16,128], index: 7, kind: output, shape index: {}]
  %s8 = sld [smem:[#allocation0]]
  $region54: #{tpu_custom_call.1} parent=0
    _
  %s10 = ssub.s32 1, %s8
  %s11 = scalar_select 0, %s10, %s8
  $region1: #{tpu_custom_call.1} parent=0
    #allocation2 [shape = 'u8[16384]{0}', space=vmem, size = 0x4000, scoped, tag = 'input window, operand 0, single buffered']
    #allocation3 [shape = 's32[1]{0}', space=sflag, size = 0x4, scoped, tag = 'scoped memory for tpu_custom_call.1']
    #allocation4 [shape = 's32[1]{0}', space=sflag, size = 0x4, scoped, tag = 'scoped memory for tpu_custom_call.1']
    #allocation5 [shape = 'u8[262144]{0}', space=vmem, size = 0x40000, scoped, tag = 'input window, operand 1, single buffered']
    #allocation6 [shape = 's32[1]{0}', space=sflag, size = 0x4, scoped, tag = 'scoped memory for tpu_custom_call.1']
    #allocation7 [shape = 'u8[65536]{0}', space=vmem, size = 0x10000, scoped, tag = 'input window, operand 3, single buffered']
    #allocation8 [shape = 'u8[32768]{0}', space=vmem, size = 0x8000, scoped, tag = 'input window, operand 5, single buffered']
    #allocation9 [shape = 's32[1]{0}', space=sflag, size = 0x4, scoped, tag = 'scoped memory for tpu_custom_call.1']
    #allocation10 [shape = 'u8[8192]{0}', space=vmem, size = 0x2000, scoped, tag = 'output window, operand 0, single buffered']
    %12 = vsyncpa [#allocation3], 0
    %13 = vsyncpa [#allocation6], 0
    %14 = vsyncpa [#allocation9], 0
    %15 = vsyncpa [#allocation4], 0
    // Predicated region
    $region2: #{tpu_custom_call.1} parent=1 // pred_check
      _
    $region3: #{tpu_custom_call.1} parent=1 // pred_check_branch
      %17 = sbr.rel (0) target = $region5
    $region4: #{tpu_custom_call.1} parent=1 // pred_region
      %s19 = ssub.s32 512, 512
      %20 = vsyncadd [#allocation3], %s19
      %s21 = sshll.u32 [#allocation2], 4
      %s22 = int_to_ptr.vmem [resolvable:$true] %s21
      %27 = dma.hbm_to_vmem [thread:$0]  %s0, 512, %s22, [#allocation3], 256, 256, 16
    $region5: #{tpu_custom_call.1} parent=1 // pred_fallthru
      _
    // Predicated region
    $region6: #{tpu_custom_call.1} parent=1 // pred_check
      _
    $region7: #{tpu_custom_call.1} parent=1 // pred_check_branch
      %29 = sbr.rel (0) target = $region9
    $region8: #{tpu_custom_call.1} parent=1 // pred_region
      %s31 = ssub.s32 8192, 8192
      %32 = vsyncadd [#allocation6], %s31
      %s33 = sshll.u32 [#allocation5], 4
      %s34 = int_to_ptr.vmem [resolvable:$true] %s33
      %39 = dma.hbm_to_vmem [thread:$0]  %s1, 8192, %s34, [#allocation6], 128, 128, 8
    $region9: #{tpu_custom_call.1} parent=1 // pred_fallthru
      _
    // Predicated region
    $region10: #{tpu_custom_call.1} parent=1 // pred_check
      _
    $region11: #{tpu_custom_call.1} parent=1 // pred_check_branch
      %41 = sbr.rel (0) target = $region13
    $region12: #{tpu_custom_call.1} parent=1 // pred_region
      _
    $region13: #{tpu_custom_call.1} parent=1 // pred_fallthru
      _
    // Predicated region
    $region14: #{tpu_custom_call.1} parent=1 // pred_check
      _
    $region15: #{tpu_custom_call.1} parent=1 // pred_check_branch
      %43 = sbr.rel (0) target = $region17
    $region16: #{tpu_custom_call.1} parent=1 // pred_region
      %s45 = ssub.s32 2048, 2048
      %46 = vsyncadd [#allocation6], %s45
      %s47 = sshll.u32 [#allocation7], 4
      %s48 = int_to_ptr.vmem [resolvable:$true] %s47
      %53 = dma.hbm_to_vmem [thread:$0]  %s3, 2048, %s48, [#allocation6], 64, 64, 4
    $region17: #{tpu_custom_call.1} parent=1 // pred_fallthru
      _
    // Predicated region
    $region18: #{tpu_custom_call.1} parent=1 // pred_check
      _
    $region19: #{tpu_custom_call.1} parent=1 // pred_check_branch
      %55 = sbr.rel (0) target = $region21
    $region20: #{tpu_custom_call.1} parent=1 // pred_region
      _
    $region21: #{tpu_custom_call.1} parent=1 // pred_fallthru
      _
    // Predicated region
    $region22: #{tpu_custom_call.1} parent=1 // pred_check
      _
    $region23: #{tpu_custom_call.1} parent=1 // pred_check_branch
      %57 = sbr.rel (0) target = $region25
    $region24: #{tpu_custom_call.1} parent=1 // pred_region
      %s59 = ssub.s32 1024, 1024
      %60 = vsyncadd [#allocation9], %s59
      %s61 = sshll.u32 [#allocation8], 4
      %s62 = int_to_ptr.vmem [resolvable:$true] %s61
      %67 = dma.hbm_to_vmem [thread:$0]  %s5, 1024, %s62, [#allocation9], 64, 64, 4
    $region25: #{tpu_custom_call.1} parent=1 // pred_fallthru
      _
    // Predicated region
    $region26: #{tpu_custom_call.1} parent=1 // pred_check
      _
    $region27: #{tpu_custom_call.1} parent=1 // pred_check_branch
      %69 = sbr.rel (0) target = $region29
    $region28: #{tpu_custom_call.1} parent=1 // pred_region
      _
    $region29: #{tpu_custom_call.1} parent=1 // pred_fallthru
      _
    // Predicated region
    $region30: #{tpu_custom_call.1} parent=1 // pred_check
      _
    $region31: #{tpu_custom_call.1} parent=1 // pred_check_branch
      %71 = sbr.rel (0) target = $region33
    $region32: #{tpu_custom_call.1} parent=1 // pred_region
      %72 = dma.done [#allocation3], 512
    $region33: #{tpu_custom_call.1} parent=1 // pred_fallthru
      _
    // Predicated region
    $region34: #{tpu_custom_call.1} parent=1 // pred_check
      _
    $region35: #{tpu_custom_call.1} parent=1 // pred_check_branch
      %74 = sbr.rel (0) target = $region37
    $region36: #{tpu_custom_call.1} parent=1 // pred_region
      %75 = dma.done [#allocation6], 8192
    $region37: #{tpu_custom_call.1} parent=1 // pred_fallthru
      _
    // Predicated region
    $region38: #{tpu_custom_call.1} parent=1 // pred_check
      _
    $region39: #{tpu_custom_call.1} parent=1 // pred_check_branch
      %77 = sbr.rel (0) target = $region41
    $region40: #{tpu_custom_call.1} parent=1 // pred_region
      %78 = dma.done [#allocation6], 2048
    $region41: #{tpu_custom_call.1} parent=1 // pred_fallthru
      _
    // Predicated region
    $region42: #{tpu_custom_call.1} parent=1 // pred_check
      _
    $region43: #{tpu_custom_call.1} parent=1 // pred_check_branch
      %80 = sbr.rel (0) target = $region45
    $region44: #{tpu_custom_call.1} parent=1 // pred_region
      %81 = dma.done [#allocation9], 1024
    $region45: #{tpu_custom_call.1} parent=1 // pred_fallthru
      _
    %v83 = vld [vmem:[#allocation2] sm:$0xff]
    %v84 = vld [vmem:[#allocation2 + $0x8] sm:$0xff]
    %v85 = vld [vmem:[#allocation2 + $0x10] sm:$0xff]
    %v86 = vld [vmem:[#allocation2 + $0x18] sm:$0xff]
    %v87 = vld [vmem:[#allocation5] sm:$0xff]
    %v88 = vld [vmem:[#allocation5 + $0x8] sm:$0xff]
    %v89 = vld [vmem:[#allocation5 + $0x10] sm:$0xff]
    %v90 = vld [vmem:[#allocation5 + $0x18] sm:$0xff]
    %v91 = vld [vmem:[#allocation5 + $0x20] sm:$0xff]
    %v92 = vld [vmem:[#allocation5 + $0x28] sm:$0xff]
    %v93 = vld [vmem:[#allocation5 + $0x30] sm:$0xff]
    %v94 = vld [vmem:[#allocation5 + $0x38] sm:$0xff]
    %v95 = vld [vmem:[#allocation5 + $0x40] sm:$0xff]
    %v96 = vld [vmem:[#allocation5 + $0x48] sm:$0xff]
    %v97 = vld [vmem:[#allocation5 + $0x50] sm:$0xff]
    %v98 = vld [vmem:[#allocation5 + $0x58] sm:$0xff]
    %v99 = vld [vmem:[#allocation5 + $0x60] sm:$0xff]
    %v100 = vld [vmem:[#allocation5 + $0x68] sm:$0xff]
    %v101 = vld [vmem:[#allocation5 + $0x70] sm:$0xff]
    %v102 = vld [vmem:[#allocation5 + $0x78] sm:$0xff]
    %v103 = vld [vmem:[#allocation5 + $0x80] sm:$0xff]
    %v104 = vld [vmem:[#allocation5 + $0x88] sm:$0xff]
    %v105 = vld [vmem:[#allocation5 + $0x90] sm:$0xff]
    %v106 = vld [vmem:[#allocation5 + $0x98] sm:$0xff]
    %v107 = vld [vmem:[#allocation5 + $0xa0] sm:$0xff]
    %v108 = vld [vmem:[#allocation5 + $0xa8] sm:$0xff]
    %v109 = vld [vmem:[#allocation5 + $0xb0] sm:$0xff]
    %v110 = vld [vmem:[#allocation5 + $0xb8] sm:$0xff]
    %v111 = vld [vmem:[#allocation5 + $0xc0] sm:$0xff]
    %v112 = vld [vmem:[#allocation5 + $0xc8] sm:$0xff]
    %v113 = vld [vmem:[#allocation5 + $0xd0] sm:$0xff]
    %v114 = vld [vmem:[#allocation5 + $0xd8] sm:$0xff]
    %v115 = vld [vmem:[#allocation5 + $0xe0] sm:$0xff]
    %v116 = vld [vmem:[#allocation5 + $0xe8] sm:$0xff]
    %v117 = vld [vmem:[#allocation5 + $0xf0] sm:$0xff]
    %v118 = vld [vmem:[#allocation5 + $0xf8] sm:$0xff]
    %v119 = vld [vmem:[#allocation5 + $0x100] sm:$0xff]
    %v120 = vld [vmem:[#allocation5 + $0x108] sm:$0xff]
    %v121 = vld [vmem:[#allocation5 + $0x110] sm:$0xff]
    %v122 = vld [vmem:[#allocation5 + $0x118] sm:$0xff]
    %v123 = vld [vmem:[#allocation5 + $0x120] sm:$0xff]
    %v124 = vld [vmem:[#allocation5 + $0x128] sm:$0xff]
    %v125 = vld [vmem:[#allocation5 + $0x130] sm:$0xff]
    %v126 = vld [vmem:[#allocation5 + $0x138] sm:$0xff]
    %v127 = vld [vmem:[#allocation5 + $0x140] sm:$0xff]
    %v128 = vld [vmem:[#allocation5 + $0x148] sm:$0xff]
    %v129 = vld [vmem:[#allocation5 + $0x150] sm:$0xff]
    %v130 = vld [vmem:[#allocation5 + $0x158] sm:$0xff]
    %v131 = vld [vmem:[#allocation5 + $0x160] sm:$0xff]
    %v132 = vld [vmem:[#allocation5 + $0x168] sm:$0xff]
    %v133 = vld [vmem:[#allocation5 + $0x170] sm:$0xff]
    %v134 = vld [vmem:[#allocation5 + $0x178] sm:$0xff]
    %v135 = vld [vmem:[#allocation5 + $0x180] sm:$0xff]
    %v136 = vld [vmem:[#allocation5 + $0x188] sm:$0xff]
    %v137 = vld [vmem:[#allocation5 + $0x190] sm:$0xff]
    %v138 = vld [vmem:[#allocation5 + $0x198] sm:$0xff]
    %v139 = vld [vmem:[#allocation5 + $0x1a0] sm:$0xff]
    %v140 = vld [vmem:[#allocation5 + $0x1a8] sm:$0xff]
    %v141 = vld [vmem:[#allocation5 + $0x1b0] sm:$0xff]
    %v142 = vld [vmem:[#allocation5 + $0x1b8] sm:$0xff]
    %v143 = vld [vmem:[#allocation5 + $0x1c0] sm:$0xff]
    %v144 = vld [vmem:[#allocation5 + $0x1c8] sm:$0xff]
    %v145 = vld [vmem:[#allocation5 + $0x1d0] sm:$0xff]
    %v146 = vld [vmem:[#allocation5 + $0x1d8] sm:$0xff]
    %v147 = vld [vmem:[#allocation5 + $0x1e0] sm:$0xff]
    %v148 = vld [vmem:[#allocation5 + $0x1e8] sm:$0xff]
    %v149 = vld [vmem:[#allocation5 + $0x1f0] sm:$0xff]
    %v150 = vld [vmem:[#allocation5 + $0x1f8] sm:$0xff]
    %v151 = vld [vmem:[%s2] sm:$0x3]
    %v153 = vlaneseq
    %v154 = vshrl.u32 %v153, 7
    %v155 = vsub.s32 0, %v154
    %v156 = vrot.slane %v151, %v155
    %v157 = vlaneseq
    %v158 = vshrl.u32 %v157, 7
    %v159 = vsub.s32 1, %v158
    %v160 = vrot.slane %v151, %v159
    %v167 = vunpack.c.l.b16 %v83
    %v168 = vunpack.c.h.b16 %v83
    %v169 = vunpack.c.l.b16 %v84
    %v170 = vunpack.c.h.b16 %v84
    %v171 = vunpack.c.l.b16 %v85
    %v172 = vunpack.c.h.b16 %v85
    %v173 = vunpack.c.l.b16 %v86
    %v174 = vunpack.c.h.b16 %v86
    %v175 = vpack.c.b16 %v171, %v167
    %v176 = vpack.c.b16 %v172, %v168
    %v177 = vpack.c.b16 %v173, %v169
    %v178 = vpack.c.b16 %v174, %v170
    %v247 = vunpack.c.l.b16 %v87
    %v248 = vunpack.c.h.b16 %v87
    %v249 = vunpack.c.l.b16 %v88
    %v250 = vunpack.c.h.b16 %v88
    %v251 = vunpack.c.l.b16 %v89
    %v252 = vunpack.c.h.b16 %v89
    %v253 = vunpack.c.l.b16 %v90
    %v254 = vunpack.c.h.b16 %v90
    %v255 = vunpack.c.l.b16 %v91
    %v256 = vunpack.c.h.b16 %v91
    %v257 = vunpack.c.l.b16 %v92
    %v258 = vunpack.c.h.b16 %v92
    %v259 = vunpack.c.l.b16 %v93
    %v260 = vunpack.c.h.b16 %v93
    %v261 = vunpack.c.l.b16 %v94
    %v262 = vunpack.c.h.b16 %v94
    %v263 = vunpack.c.l.b16 %v95
    %v264 = vunpack.c.h.b16 %v95
    %v265 = vunpack.c.l.b16 %v96
    %v266 = vunpack.c.h.b16 %v96
    %v267 = vunpack.c.l.b16 %v97
    %v268 = vunpack.c.h.b16 %v97
    %v269 = vunpack.c.l.b16 %v98
    %v270 = vunpack.c.h.b16 %v98
    %v271 = vunpack.c.l.b16 %v99
    %v272 = vunpack.c.h.b16 %v99
    %v273 = vunpack.c.l.b16 %v100
    %v274 = vunpack.c.h.b16 %v100
    %v275 = vunpack.c.l.b16 %v101
    %v276 = vunpack.c.h.b16 %v101
    %v277 = vunpack.c.l.b16 %v102
    %v278 = vunpack.c.h.b16 %v102
    %v279 = vunpack.c.l.b16 %v103
    %v280 = vunpack.c.h.b16 %v103
    %v281 = vunpack.c.l.b16 %v104
    %v282 = vunpack.c.h.b16 %v104
    %v283 = vunpack.c.l.b16 %v105
    %v284 = vunpack.c.h.b16 %v105
    %v285 = vunpack.c.l.b16 %v106
    %v286 = vunpack.c.h.b16 %v106
    %v287 = vunpack.c.l.b16 %v107
    %v288 = vunpack.c.h.b16 %v107
    %v289 = vunpack.c.l.b16 %v108
    %v290 = vunpack.c.h.b16 %v108
    %v291 = vunpack.c.l.b16 %v109
    %v292 = vunpack.c.h.b16 %v109
    %v293 = vunpack.c.l.b16 %v110
    %v294 = vunpack.c.h.b16 %v110
    %v295 = vunpack.c.l.b16 %v111
    %v296 = vunpack.c.h.b16 %v111
    %v297 = vunpack.c.l.b16 %v112
    %v298 = vunpack.c.h.b16 %v112
    %v299 = vunpack.c.l.b16 %v113
    %v300 = vunpack.c.h.b16 %v113
    %v301 = vunpack.c.l.b16 %v114
    %v302 = vunpack.c.h.b16 %v114
    %v303 = vunpack.c.l.b16 %v115
    %v304 = vunpack.c.h.b16 %v115
    %v305 = vunpack.c.l.b16 %v116
    %v306 = vunpack.c.h.b16 %v116
    %v307 = vunpack.c.l.b16 %v117
    %v308 = vunpack.c.h.b16 %v117
    %v309 = vunpack.c.l.b16 %v118
    %v310 = vunpack.c.h.b16 %v118
    %v311 = vunpack.c.l.b16 %v119
    %v312 = vunpack.c.h.b16 %v119
    %v313 = vunpack.c.l.b16 %v120
    %v314 = vunpack.c.h.b16 %v120
    %v315 = vunpack.c.l.b16 %v121
    %v316 = vunpack.c.h.b16 %v121
    %v317 = vunpack.c.l.b16 %v122
    %v318 = vunpack.c.h.b16 %v122
    %v319 = vunpack.c.l.b16 %v123
    %v320 = vunpack.c.h.b16 %v123
    %v321 = vunpack.c.l.b16 %v124
    %v322 = vunpack.c.h.b16 %v124
    %v323 = vunpack.c.l.b16 %v125
    %v324 = vunpack.c.h.b16 %v125
    %v325 = vunpack.c.l.b16 %v126
    %v326 = vunpack.c.h.b16 %v126
    %v327 = vunpack.c.l.b16 %v127
    %v328 = vunpack.c.h.b16 %v127
    %v329 = vunpack.c.l.b16 %v128
    %v330 = vunpack.c.h.b16 %v128
    %v331 = vunpack.c.l.b16 %v129
    %v332 = vunpack.c.h.b16 %v129
    %v333 = vunpack.c.l.b16 %v130
    %v334 = vunpack.c.h.b16 %v130
    %v335 = vunpack.c.l.b16 %v131
    %v336 = vunpack.c.h.b16 %v131
    %v337 = vunpack.c.l.b16 %v132
    %v338 = vunpack.c.h.b16 %v132
    %v339 = vunpack.c.l.b16 %v133
    %v340 = vunpack.c.h.b16 %v133
    %v341 = vunpack.c.l.b16 %v134
    %v342 = vunpack.c.h.b16 %v134
    %v343 = vunpack.c.l.b16 %v135
    %v344 = vunpack.c.h.b16 %v135
    %v345 = vunpack.c.l.b16 %v136
    %v346 = vunpack.c.h.b16 %v136
    %v347 = vunpack.c.l.b16 %v137
    %v348 = vunpack.c.h.b16 %v137
    %v349 = vunpack.c.l.b16 %v138
    %v350 = vunpack.c.h.b16 %v138
    %v351 = vunpack.c.l.b16 %v139
    %v352 = vunpack.c.h.b16 %v139
    %v353 = vunpack.c.l.b16 %v140
    %v354 = vunpack.c.h.b16 %v140
    %v355 = vunpack.c.l.b16 %v141
    %v356 = vunpack.c.h.b16 %v141
    %v357 = vunpack.c.l.b16 %v142
    %v358 = vunpack.c.h.b16 %v142
    %v359 = vunpack.c.l.b16 %v143
    %v360 = vunpack.c.h.b16 %v143
    %v361 = vunpack.c.l.b16 %v144
    %v362 = vunpack.c.h.b16 %v144
    %v363 = vunpack.c.l.b16 %v145
    %v364 = vunpack.c.h.b16 %v145
    %v365 = vunpack.c.l.b16 %v146
    %v366 = vunpack.c.h.b16 %v146
    %v367 = vunpack.c.l.b16 %v147
    %v368 = vunpack.c.h.b16 %v147
    %v369 = vunpack.c.l.b16 %v148
    %v370 = vunpack.c.h.b16 %v148
    %v371 = vunpack.c.l.b16 %v149
    %v372 = vunpack.c.h.b16 %v149
    %v373 = vunpack.c.l.b16 %v150
    %v374 = vunpack.c.h.b16 %v150
    %v375 = vpack.c.b16 %v249, %v247
    %v376 = vpack.c.b16 %v250, %v248
    %v377 = vpack.c.b16 %v253, %v251
    %v378 = vpack.c.b16 %v254, %v252
    %v379 = vpack.c.b16 %v257, %v255
    %v380 = vpack.c.b16 %v258, %v256
    %v381 = vpack.c.b16 %v261, %v259
    %v382 = vpack.c.b16 %v262, %v260
    %v383 = vpack.c.b16 %v265, %v263
    %v384 = vpack.c.b16 %v266, %v264
    %v385 = vpack.c.b16 %v269, %v267
    %v386 = vpack.c.b16 %v270, %v268
    %v387 = vpack.c.b16 %v273, %v271
    %v388 = vpack.c.b16 %v274, %v272
    %v389 = vpack.c.b16 %v277, %v275
    %v390 = vpack.c.b16 %v278, %v276
    %v391 = vpack.c.b16 %v281, %v279
    %v392 = vpack.c.b16 %v282, %v280
    %v393 = vpack.c.b16 %v285, %v283
    %v394 = vpack.c.b16 %v286, %v284
    %v395 = vpack.c.b16 %v289, %v287
    %v396 = vpack.c.b16 %v290, %v288
    %v397 = vpack.c.b16 %v293, %v291
    %v398 = vpack.c.b16 %v294, %v292
    %v399 = vpack.c.b16 %v297, %v295
    %v400 = vpack.c.b16 %v298, %v296
    %v401 = vpack.c.b16 %v301, %v299
    %v402 = vpack.c.b16 %v302, %v300
    %v403 = vpack.c.b16 %v305, %v303
    %v404 = vpack.c.b16 %v306, %v304
    %v405 = vpack.c.b16 %v309, %v307
    %v406 = vpack.c.b16 %v310, %v308
    %v407 = vpack.c.b16 %v313, %v311
    %v408 = vpack.c.b16 %v314, %v312
    %v409 = vpack.c.b16 %v317, %v315
    %v410 = vpack.c.b16 %v318, %v316
    %v411 = vpack.c.b16 %v321, %v319
    %v412 = vpack.c.b16 %v322, %v320
    %v413 = vpack.c.b16 %v325, %v323
    %v414 = vpack.c.b16 %v326, %v324
    %v415 = vpack.c.b16 %v329, %v327
    %v416 = vpack.c.b16 %v330, %v328
    %v417 = vpack.c.b16 %v333, %v331
    %v418 = vpack.c.b16 %v334, %v332
    %v419 = vpack.c.b16 %v337, %v335
    %v420 = vpack.c.b16 %v338, %v336
    %v421 = vpack.c.b16 %v341, %v339
    %v422 = vpack.c.b16 %v342, %v340
    %v423 = vpack.c.b16 %v345, %v343
    %v424 = vpack.c.b16 %v346, %v344
    %v425 = vpack.c.b16 %v349, %v347
    %v426 = vpack.c.b16 %v350, %v348
    %v427 = vpack.c.b16 %v353, %v351
    %v428 = vpack.c.b16 %v354, %v352
    %v429 = vpack.c.b16 %v357, %v355
    %v430 = vpack.c.b16 %v358, %v356
    %v431 = vpack.c.b16 %v361, %v359
    %v432 = vpack.c.b16 %v362, %v360
    %v433 = vpack.c.b16 %v365, %v363
    %v434 = vpack.c.b16 %v366, %v364
    %v435 = vpack.c.b16 %v369, %v367
    %v436 = vpack.c.b16 %v370, %v368
    %v437 = vpack.c.b16 %v373, %v371
    %v438 = vpack.c.b16 %v374, %v372
    %503 = vmatprep.subr.bf16.mxu0 %v376
    %504 = vmatpush1.bf16.msra.mxu0 %v375
    %505 = vmatprep.subr.bf16.mxu0 %v378
    %506 = vmatpush1.bf16.msra.mxu0 %v377
    %507 = vmatprep.subr.bf16.mxu0 %v380
    %508 = vmatpush1.bf16.msra.mxu0 %v379
    %509 = vmatprep.subr.bf16.mxu0 %v382
    %510 = vmatpush1.bf16.msra.mxu0 %v381
    %511 = vmatprep.subr.bf16.mxu0 %v384
    %512 = vmatpush1.bf16.msra.mxu0 %v383
    %513 = vmatprep.subr.bf16.mxu0 %v386
    %514 = vmatpush1.bf16.msra.mxu0 %v385
    %515 = vmatprep.subr.bf16.mxu0 %v388
    %516 = vmatpush1.bf16.msra.mxu0 %v387
    %517 = vmatprep.subr.bf16.mxu0 %v390
    %518 = vmatpush1.bf16.msra.mxu0 %v389
    %519 = vmatprep.subr.bf16.mxu0 %v392
    %520 = vmatpush1.bf16.msra.mxu0 %v391
    %521 = vmatprep.subr.bf16.mxu0 %v394
    %522 = vmatpush1.bf16.msra.mxu0 %v393
    %523 = vmatprep.subr.bf16.mxu0 %v396
    %524 = vmatpush1.bf16.msra.mxu0 %v395
    %525 = vmatprep.subr.bf16.mxu0 %v398
    %526 = vmatpush1.bf16.msra.mxu0 %v397
    %527 = vmatprep.subr.bf16.mxu0 %v400
    %528 = vmatpush1.bf16.msra.mxu0 %v399
    %529 = vmatprep.subr.bf16.mxu0 %v402
    %530 = vmatpush1.bf16.msra.mxu0 %v401
    %531 = vmatprep.subr.bf16.mxu0 %v404
    %532 = vmatpush1.bf16.msra.mxu0 %v403
    %533 = vmatprep.subr.bf16.mxu0 %v406
    %534 = vmatpush1.bf16.msra.mxu0 %v405
    %535 = vmatprep.mubr.bf16.mxu0 %v176
    %536 = vmatmul.mubr.bf16.gmra.mrb[0].mxu0 %v175
    %v537 = vpop.f32.mrb[0].mxu0
    %v538 = vadd.f32 %v156, %v537
    %v539 = vpop.f32.mrb[0].mxu0
    %v540 = vadd.f32 %v160, %v539
    %v541 = vpop.f32.mrb[0].mxu0
    %v542 = vadd.f32 %v156, %v541
    %v543 = vpop.f32.mrb[0].mxu0
    %v544 = vadd.f32 %v160, %v543
    %545 = vdwg.mxu0
    %546 = vmatprep.subr.bf16.mxu0 %v408
    %547 = vmatpush1.bf16.msra.mxu0 %v407
    %548 = vmatprep.subr.bf16.mxu0 %v410
    %549 = vmatpush1.bf16.msra.mxu0 %v409
    %550 = vmatprep.subr.bf16.mxu0 %v412
    %551 = vmatpush1.bf16.msra.mxu0 %v411
    %552 = vmatprep.subr.bf16.mxu0 %v414
    %553 = vmatpush1.bf16.msra.mxu0 %v413
    %554 = vmatprep.subr.bf16.mxu0 %v416
    %555 = vmatpush1.bf16.msra.mxu0 %v415
    %556 = vmatprep.subr.bf16.mxu0 %v418
    %557 = vmatpush1.bf16.msra.mxu0 %v417
    %558 = vmatprep.subr.bf16.mxu0 %v420
    %559 = vmatpush1.bf16.msra.mxu0 %v419
    %560 = vmatprep.subr.bf16.mxu0 %v422
    %561 = vmatpush1.bf16.msra.mxu0 %v421
    %562 = vmatprep.subr.bf16.mxu0 %v424
    %563 = vmatpush1.bf16.msra.mxu0 %v423
    %564 = vmatprep.subr.bf16.mxu0 %v426
    %565 = vmatpush1.bf16.msra.mxu0 %v425
    %566 = vmatprep.subr.bf16.mxu0 %v428
    %567 = vmatpush1.bf16.msra.mxu0 %v427
    %568 = vmatprep.subr.bf16.mxu0 %v430
    %569 = vmatpush1.bf16.msra.mxu0 %v429
    %570 = vmatprep.subr.bf16.mxu0 %v432
    %571 = vmatpush1.bf16.msra.mxu0 %v431
    %572 = vmatprep.subr.bf16.mxu0 %v434
    %573 = vmatpush1.bf16.msra.mxu0 %v433
    %574 = vmatprep.subr.bf16.mxu0 %v436
    %575 = vmatpush1.bf16.msra.mxu0 %v435
    %576 = vmatprep.subr.bf16.mxu0 %v438
    %577 = vmatpush1.bf16.msra.mxu0 %v437
    %578 = vmatprep.mubr.bf16.mxu0 %v178
    %579 = vmatmul.mubr.bf16.gmra.mrb[0].mxu0 %v177
    %v580 = vpop.f32.mrb[0].mxu0
    %v581 = vadd.f32 %v538, %v580
    %v582 = vpop.f32.mrb[0].mxu0
    %v583 = vadd.f32 %v540, %v582
    %v584 = vpop.f32.mrb[0].mxu0
    %v585 = vadd.f32 %v542, %v584
    %v586 = vpop.f32.mrb[0].mxu0
    %v587 = vadd.f32 %v544, %v586
    %588 = vdwg.mxu0
    %v589 = vmax.f32 %v581, 0.0
    %v590 = vmax.f32 %v583, 0.0
    %v591 = vmax.f32 %v585, 0.0
    %v592 = vmax.f32 %v587, 0.0
    %v593 = vpack.c.bf16 %v591, %v589
    %v594 = vpack.c.bf16 %v592, %v590
    %v595 = vld [vmem:[#allocation7] sm:$0xf]
    %v596 = vld [vmem:[#allocation7 + $0x4] sm:$0xf]
    %v597 = vld [vmem:[#allocation7 + $0x8] sm:$0xf]
    %v598 = vld [vmem:[#allocation7 + $0xc] sm:$0xf]
    %v599 = vld [vmem:[#allocation7 + $0x10] sm:$0xf]
    %v600 = vld [vmem:[#allocation7 + $0x14] sm:$0xf]
    %v601 = vld [vmem:[#allocation7 + $0x18] sm:$0xf]
    %v602 = vld [vmem:[#allocation7 + $0x1c] sm:$0xf]
    %v603 = vld [vmem:[#allocation7 + $0x20] sm:$0xf]
    %v604 = vld [vmem:[#allocation7 + $0x24] sm:$0xf]
    %v605 = vld [vmem:[#allocation7 + $0x28] sm:$0xf]
    %v606 = vld [vmem:[#allocation7 + $0x2c] sm:$0xf]
    %v607 = vld [vmem:[#allocation7 + $0x30] sm:$0xf]
    %v608 = vld [vmem:[#allocation7 + $0x34] sm:$0xf]
    %v609 = vld [vmem:[#allocation7 + $0x38] sm:$0xf]
    %v610 = vld [vmem:[#allocation7 + $0x3c] sm:$0xf]
    %v611 = vld [vmem:[#allocation7 + $0x40] sm:$0xf]
    %v612 = vld [vmem:[#allocation7 + $0x44] sm:$0xf]
    %v613 = vld [vmem:[#allocation7 + $0x48] sm:$0xf]
    %v614 = vld [vmem:[#allocation7 + $0x4c] sm:$0xf]
    %v615 = vld [vmem:[#allocation7 + $0x50] sm:$0xf]
    %v616 = vld [vmem:[#allocation7 + $0x54] sm:$0xf]
    %v617 = vld [vmem:[#allocation7 + $0x58] sm:$0xf]
    %v618 = vld [vmem:[#allocation7 + $0x5c] sm:$0xf]
    %v619 = vld [vmem:[#allocation7 + $0x60] sm:$0xf]
    %v620 = vld [vmem:[#allocation7 + $0x64] sm:$0xf]
    %v621 = vld [vmem:[#allocation7 + $0x68] sm:$0xf]
    %v622 = vld [vmem:[#allocation7 + $0x6c] sm:$0xf]
    %v623 = vld [vmem:[#allocation7 + $0x70] sm:$0xf]
    %v624 = vld [vmem:[#allocation7 + $0x74] sm:$0xf]
    %v625 = vld [vmem:[#allocation7 + $0x78] sm:$0xf]
    %v626 = vld [vmem:[#allocation7 + $0x7c] sm:$0xf]
    %v627 = vld [vmem:[%s4] sm:$0x1]
    %v629 = vlaneseq
    %v630 = vshrl.u32 %v629, 7
    %v631 = vsub.s32 0, %v630
    %v632 = vrot.slane %v627, %v631
    %v666 = vunpack.c.l.b16 %v595
    %v667 = vunpack.c.l.b16 %v596
    %v668 = vunpack.c.l.b16 %v597
    %v669 = vunpack.c.l.b16 %v598
    %v670 = vunpack.c.l.b16 %v599
    %v671 = vunpack.c.l.b16 %v600
    %v672 = vunpack.c.l.b16 %v601
    %v673 = vunpack.c.l.b16 %v602
    %v674 = vunpack.c.l.b16 %v603
    %v675 = vunpack.c.l.b16 %v604
    %v676 = vunpack.c.l.b16 %v605
    %v677 = vunpack.c.l.b16 %v606
    %v678 = vunpack.c.l.b16 %v607
    %v679 = vunpack.c.l.b16 %v608
    %v680 = vunpack.c.l.b16 %v609
    %v681 = vunpack.c.l.b16 %v610
    %v682 = vunpack.c.l.b16 %v611
    %v683 = vunpack.c.l.b16 %v612
    %v684 = vunpack.c.l.b16 %v613
    %v685 = vunpack.c.l.b16 %v614
    %v686 = vunpack.c.l.b16 %v615
    %v687 = vunpack.c.l.b16 %v616
    %v688 = vunpack.c.l.b16 %v617
    %v689 = vunpack.c.l.b16 %v618
    %v690 = vunpack.c.l.b16 %v619
    %v691 = vunpack.c.l.b16 %v620
    %v692 = vunpack.c.l.b16 %v621
    %v693 = vunpack.c.l.b16 %v622
    %v694 = vunpack.c.l.b16 %v623
    %v695 = vunpack.c.l.b16 %v624
    %v696 = vunpack.c.l.b16 %v625
    %v697 = vunpack.c.l.b16 %v626
    %v698 = vpack.c.b16 %v667, %v666
    %v699 = vpack.c.b16 %v669, %v668
    %v700 = vpack.c.b16 %v671, %v670
    %v701 = vpack.c.b16 %v673, %v672
    %v702 = vpack.c.b16 %v675, %v674
    %v703 = vpack.c.b16 %v677, %v676
    %v704 = vpack.c.b16 %v679, %v678
    %v705 = vpack.c.b16 %v681, %v680
    %v706 = vpack.c.b16 %v683, %v682
    %v707 = vpack.c.b16 %v685, %v684
    %v708 = vpack.c.b16 %v687, %v686
    %v709 = vpack.c.b16 %v689, %v688
    %v710 = vpack.c.b16 %v691, %v690
    %v711 = vpack.c.b16 %v693, %v692
    %v712 = vpack.c.b16 %v695, %v694
    %v713 = vpack.c.b16 %v697, %v696
    %730 = vmatprep.subr.bf16.mxu0 0
    %731 = vmatpush1.bf16.msra.mxu0 %v698
    %732 = vmatprep.subr.bf16.mxu0 0
    %733 = vmatpush1.bf16.msra.mxu0 %v699
    %734 = vmatprep.subr.bf16.mxu0 0
    %735 = vmatpush1.bf16.msra.mxu0 %v700
    %736 = vmatprep.subr.bf16.mxu0 0
    %737 = vmatpush1.bf16.msra.mxu0 %v701
    %738 = vmatprep.subr.bf16.mxu0 0
    %739 = vmatpush1.bf16.msra.mxu0 %v702
    %740 = vmatprep.subr.bf16.mxu0 0
    %741 = vmatpush1.bf16.msra.mxu0 %v703
    %742 = vmatprep.subr.bf16.mxu0 0
    %743 = vmatpush1.bf16.msra.mxu0 %v704
    %744 = vmatprep.subr.bf16.mxu0 0
    %745 = vmatpush1.bf16.msra.mxu0 %v705
    %746 = vmatprep.subr.bf16.mxu0 0
    %747 = vmatpush1.bf16.msra.mxu0 %v706
    %748 = vmatprep.subr.bf16.mxu0 0
    %749 = vmatpush1.bf16.msra.mxu0 %v707
    %750 = vmatprep.subr.bf16.mxu0 0
    %751 = vmatpush1.bf16.msra.mxu0 %v708
    %752 = vmatprep.subr.bf16.mxu0 0
    %753 = vmatpush1.bf16.msra.mxu0 %v709
    %754 = vmatprep.subr.bf16.mxu0 0
    %755 = vmatpush1.bf16.msra.mxu0 %v710
    %756 = vmatprep.subr.bf16.mxu0 0
    %757 = vmatpush1.bf16.msra.mxu0 %v711
    %758 = vmatprep.subr.bf16.mxu0 0
    %759 = vmatpush1.bf16.msra.mxu0 %v712
    %760 = vmatprep.subr.bf16.mxu0 0
    %761 = vmatpush1.bf16.msra.mxu0 %v713
    %762 = vmatprep.mubr.bf16.mxu0 %v594
    %763 = vmatmul.mubr.bf16.gmra.mrb[0].mxu0 %v593
    %v764 = vpop.f32.mrb[0].mxu0
    %v765 = vadd.f32 %v632, %v764
    %v766 = vpop.f32.mrb[0].mxu0
    %v767 = vpop.f32.mrb[0].mxu0
    %v768 = vadd.f32 %v632, %v767
    %v769 = vpop.f32.mrb[0].mxu0
    %770 = vdwg.mxu0
    %v771 = vmax.f32 %v765, 0.0
    %v772 = vmax.f32 %v768, 0.0
    %v773 = vpack.c.bf16 %v772, %v771
    %v774 = vld [vmem:[#allocation8] sm:$0xf]
    %v775 = vld [vmem:[#allocation8 + $0x4] sm:$0xf]
    %v776 = vld [vmem:[#allocation8 + $0x8] sm:$0xf]
    %v777 = vld [vmem:[#allocation8 + $0xc] sm:$0xf]
    %v778 = vld [vmem:[#allocation8 + $0x10] sm:$0xf]
    %v779 = vld [vmem:[#allocation8 + $0x14] sm:$0xf]
    %v780 = vld [vmem:[#allocation8 + $0x18] sm:$0xf]
    %v781 = vld [vmem:[#allocation8 + $0x1c] sm:$0xf]
    %v782 = vld [vmem:[#allocation8 + $0x20] sm:$0xf]
    %v783 = vld [vmem:[#allocation8 + $0x24] sm:$0xf]
    %v784 = vld [vmem:[#allocation8 + $0x28] sm:$0xf]
    %v785 = vld [vmem:[#allocation8 + $0x2c] sm:$0xf]
    %v786 = vld [vmem:[#allocation8 + $0x30] sm:$0xf]
    %v787 = vld [vmem:[#allocation8 + $0x34] sm:$0xf]
    %v788 = vld [vmem:[#allocation8 + $0x38] sm:$0xf]
    %v789 = vld [vmem:[#allocation8 + $0x3c] sm:$0xf]
    %v790 = vld [vmem:[%s6] sm:$0x1]
    %v792 = vlaneseq
    %v793 = vshrl.u32 %v792, 7
    %v794 = vsub.s32 0, %v793
    %v795 = vrot.slane %v790, %v794
    %v813 = vunpack.c.l.b16 %v774
    %v814 = vunpack.c.l.b16 %v775
    %v815 = vunpack.c.l.b16 %v776
    %v816 = vunpack.c.l.b16 %v777
    %v817 = vunpack.c.l.b16 %v778
    %v818 = vunpack.c.l.b16 %v779
    %v819 = vunpack.c.l.b16 %v780
    %v820 = vunpack.c.l.b16 %v781
    %v821 = vunpack.c.l.b16 %v782
    %v822 = vunpack.c.l.b16 %v783
    %v823 = vunpack.c.l.b16 %v784
    %v824 = vunpack.c.l.b16 %v785
    %v825 = vunpack.c.l.b16 %v786
    %v826 = vunpack.c.l.b16 %v787
    %v827 = vunpack.c.l.b16 %v788
    %v828 = vunpack.c.l.b16 %v789
    %v829 = vpack.c.b16 %v814, %v813
    %v830 = vpack.c.b16 %v816, %v815
    %v831 = vpack.c.b16 %v818, %v817
    %v832 = vpack.c.b16 %v820, %v819
    %v833 = vpack.c.b16 %v822, %v821
    %v834 = vpack.c.b16 %v824, %v823
    %v835 = vpack.c.b16 %v826, %v825
    %v836 = vpack.c.b16 %v828, %v827
    %845 = vmatprep.subr.bf16.mxu0 0
    %846 = vmatpush1.bf16.msra.mxu0 %v829
    %847 = vmatprep.subr.bf16.mxu0 0
    %848 = vmatpush1.bf16.msra.mxu0 %v830
    %849 = vmatprep.subr.bf16.mxu0 0
    %850 = vmatpush1.bf16.msra.mxu0 %v831
    %851 = vmatprep.subr.bf16.mxu0 0
    %852 = vmatpush1.bf16.msra.mxu0 %v832
    %853 = vmatprep.subr.bf16.mxu0 0
    %854 = vmatpush1.bf16.msra.mxu0 %v833
    %855 = vmatprep.subr.bf16.mxu0 0
    %856 = vmatpush1.bf16.msra.mxu0 %v834
    %857 = vmatprep.subr.bf16.mxu0 0
    %858 = vmatpush1.bf16.msra.mxu0 %v835
    %859 = vmatprep.subr.bf16.mxu0 0
    %860 = vmatpush1.bf16.msra.mxu0 %v836
    %861 = vmatprep.subr.bf16.mxu0 0
    %862 = vmatpush1.bf16.msra.mxu0 0
    %863 = vmatprep.subr.bf16.mxu0 0
    %864 = vmatpush1.bf16.msra.mxu0 0
    %865 = vmatprep.subr.bf16.mxu0 0
    %866 = vmatpush1.bf16.msra.mxu0 0
    %867 = vmatprep.subr.bf16.mxu0 0
    %868 = vmatpush1.bf16.msra.mxu0 0
    %869 = vmatprep.subr.bf16.mxu0 0
    %870 = vmatpush1.bf16.msra.mxu0 0
    %871 = vmatprep.subr.bf16.mxu0 0
    %872 = vmatpush1.bf16.msra.mxu0 0
    %873 = vmatprep.subr.bf16.mxu0 0
    %874 = vmatpush1.bf16.msra.mxu0 0
    %875 = vmatprep.subr.bf16.mxu0 0
    %876 = vmatpush1.bf16.msra.mxu0 0
    %877 = vmatprep.mubr.bf16.mxu0 0
    %878 = vmatmul.mubr.bf16.gmra.mrb[0].mxu0 %v773
    %v879 = vpop.f32.mrb[0].mxu0
    %v880 = vadd.f32 %v795, %v879
    %v881 = vpop.f32.mrb[0].mxu0
    %v882 = vpop.f32.mrb[0].mxu0
    %v883 = vadd.f32 %v795, %v882
    %v884 = vpop.f32.mrb[0].mxu0
    %885 = vdwg.mxu0
    %886 = vst [vmem:[#allocation10] sm:$0xff] %v880
    %887 = vst [vmem:[#allocation10 + $0x8] sm:$0xff] %v883
    // Predicated region
    $region46: #{tpu_custom_call.1} parent=1 // pred_check
      _
    $region47: #{tpu_custom_call.1} parent=1 // pred_check_branch
      %889 = sbr.rel (0) target = $region49
    $region48: #{tpu_custom_call.1} parent=1 // pred_region
      %s891 = ssub.s32 256, 256
      %892 = vsyncadd [#allocation4], %s891
      %s893 = sshll.u32 [#allocation10], 4
      %s894 = int_to_ptr.vmem [resolvable:$true] %s893
      %899 = dma.vmem_to_hbm [thread:$0]  %s894, 256, %s7, [#allocation4], 128, 128, 8
    $region49: #{tpu_custom_call.1} parent=1 // pred_fallthru
      _
    // Predicated region
    $region50: #{tpu_custom_call.1} parent=1 // pred_check
      _
    $region51: #{tpu_custom_call.1} parent=1 // pred_check_branch
      %901 = sbr.rel (0) target = $region53
    $region52: #{tpu_custom_call.1} parent=1 // pred_region
      %902 = dma.done [#allocation4], 256
    $region53: #{tpu_custom_call.1} parent=1 // pred_fallthru
      _
    %903 = vsyncpa [#allocation3], 1
    %904 = vsyncpa [#allocation6], 1
    %905 = vsyncpa [#allocation9], 1
    %906 = vsyncpa [#allocation4], 1

</llo_original>
